<compile_context>
chip_gen: v6e
topology: v6e:2x2x1
jax: 0.10.0
libtpu: 0.0.40
codegen_flags: <defaults>
</compile_context>

<pallas_src>
import jax
import jax.numpy as jnp
from jax.experimental import pallas as pl
from jax.experimental.pallas import tpu as pltpu

SMALL_NUMBER = 1e-8
BN_EPS = 1e-5

LANE = 128      # TPU lane width
SUBLANE = 8     # TPU sublane width


def _round_up(x, m):
    return ((x + m - 1) // m) * m


def _tpu_vmem_bytes():
    """Physical per-core VMEM, with a conservative fallback (v7x = 64 MiB)."""
    try:
        info = pltpu.get_tpu_info()
        for attr in ("vmem_capacity_bytes", "vmem_bytes", "vmem_size_bytes"):
            v = getattr(info, attr, None)
            if v:
                return int(v)
    except Exception:
        pass
    return 64 * 1024 * 1024


# ----------------------------------------------------------------------------
# Kernel bodies
# ----------------------------------------------------------------------------
def _sigmoid_weights(scores, scale, shift):
    """Eval-mode BatchNorm1d(L) folded to per-position scale/shift, sigmoid.

    The padding mask is folded into the augmented embedding table (row 0
    zeroed + not-a-pad indicator column), so this per-token path is just one
    FMA (VPU) + one sigmoid (EUP).
    """
    return jax.nn.sigmoid(scores * scale + shift).astype(jnp.bfloat16)


def _weighted_mean_normalize(sig, emb_aug, out_ref):
    """Masked weighted mean over L + fused cosine (L2) normalization.

    sig:     [TB, 1, L]   bf16 sigmoid weights (mask NOT applied here)
    emb_aug: [TB, L, E+1] bf16; cols 0..E-1 = embeddings with the padding row
             zeroed, col E = not-a-pad indicator.
    One batched MXU contraction (f32 accumulate) therefore yields both the
    masked weighted sum (cols 0..E-1) and the masked weight sum (col E).
    """
    TB, L, Ea = emb_aug.shape
    E = Ea - 1
    res = jnp.einsum('bql,ble->bqe', sig, emb_aug,
                     preferred_element_type=jnp.float32)        # [TB, 1, E+1]
    wsum = res[:, :, :E]                                        # [TB, 1, E]
    denom = res[:, :, E:] + SMALL_NUMBER                        # [TB, 1, 1]
    mean = wsum / denom                                         # exact divide
    # Cosine normalization fused into the encoder epilogue (same eps placement
    # as the PyTorch reference: norm = ||mean|| + eps).
    norm = jnp.sqrt(jnp.sum(mean * mean, axis=2, keepdims=True)) + SMALL_NUMBER
    out_ref[...] = (mean / norm).astype(out_ref.dtype)


def _encoder_stream_kernel(scores_ref, scale_ref, shift_ref, emb_ref, out_ref):
    """Large-vocab path: gathered [TB, L, E+1] bf16 embeddings are streamed."""
    sig = _sigmoid_weights(scores_ref[...], scale_ref[...], shift_ref[...])
    _weighted_mean_normalize(sig, emb_ref[...], out_ref)


def _encoder_gather_kernel(ids_ref, scores_ref, scale_ref, shift_ref,
                           table_ref, out_ref):
    """Small-vocab path: resident bf16 table, one-hot gather on the MXU."""
    TB, _, L = scores_ref.shape
    Vp, Ea = table_ref.shape
    ids = ids_ref[...]                                          # [TB*L, 1] int32
    onehot = (ids == jax.lax.broadcasted_iota(
        jnp.int32, (TB * L, Vp), 1)).astype(jnp.bfloat16)       # [TB*L, Vp]
    # Exact row selection: each output row is a single bf16 table row.
    emb_aug = jnp.dot(onehot, table_ref[...],
                      preferred_element_type=jnp.float32)
    emb_aug = emb_aug.astype(jnp.bfloat16).reshape(TB, L, Ea)
    sig = _sigmoid_weights(scores_ref[...], scale_ref[...], shift_ref[...])
    _weighted_mean_normalize(sig, emb_aug, out_ref)


def _cosine_sim_kernel(q_ref, c_ref, o_ref):
    """Operands are already L2-normalized by the encoder: pure A @ B.T."""
    o_ref[...] = jax.lax.dot_general(
        q_ref[...], c_ref[...],
        dimension_numbers=(((1,), (1,)), ((), ())),
        preferred_element_type=jnp.float32)


# ----------------------------------------------------------------------------
# Wrappers
# ----------------------------------------------------------------------------
def _encode(seqs, tower, *, force=None):
    """Encode token ids -> L2-normalized weighted-mean embedding, [B, E]."""
    ids = seqs.astype(jnp.int32)
    B, L = ids.shape
    table = tower["emb"].astype(jnp.float32)                    # [V, E]
    V, E = table.shape
    Ea = E + 1

    # Fold eval-mode BatchNorm1d(L) into per-position scale/shift.
    scale = (tower["gamma"] / jnp.sqrt(tower["var"] + BN_EPS)).astype(jnp.float32)
    shift = (tower["beta"] - tower["mean"] * scale).astype(jnp.float32)

    # Linear(E->1, bias=False) commutes with the eval-mode lookup:
    # score[b, l] = table[ids[b, l]] . w == (table @ w)[ids[b, l]]  (f32, exact).
    tw = table @ tower["w"].astype(jnp.float32)                 # [V]

    # Augmented bf16 table: zeroed padding row == numerator mask; indicator
    # column == denominator mask.
    table_val = table.at[0].set(0.0)
    indicator = (jnp.arange(V) != 0).astype(jnp.float32)[:, None]
    table_aug = jnp.concatenate([table_val, indicator], axis=1).astype(jnp.bfloat16)

    Vp = _round_up(V, SUBLANE)

    # Per-generation VMEM sizing (v5e/v6e 128 MiB, v7x 64 MiB per core).
    phys = _tpu_vmem_bytes()
    budget = phys // 2
    vmem_limit = (phys * 3) // 4

    # Per-batch-row VMEM footprint estimates, including (8,128)-tile padding
    # of narrow trailing dims.
    lane_ea = _round_up(Ea, LANE)
    row_stream = (2 * L * lane_ea * 2      # double-buffered bf16 emb block
                  + 2 * 8 * L * 4          # double-buffered f32 scores block
                  + 64 * L                 # score-path temporaries
                  + 32 * 1024)             # epilogue / output slabs
    lane_v = _round_up(Vp, LANE)
    row_gather = (2 * L * LANE * 4         # double-buffered i32 ids block
                  + 2 * 8 * L * 4          # double-buffered f32 scores block
                  + L * lane_v * 6         # iota + one-hot intermediates
                  + L * lane_ea * 6        # gathered emb (f32 + bf16 copies)
                  + 64 * L + 32 * 1024)
    table_vmem = 2 * Vp * lane_ea * 2

    if force == "stream":
        use_gather = False
    elif force == "gather":
        assert L % SUBLANE == 0, "in-kernel one-hot gather needs L % 8 == 0"
        use_gather = True
    else:
        use_gather = (L % SUBLANE == 0
                      and Vp <= 1024       # one-hot matmul beats streaming 4*E B/token
                      and (budget - table_vmem) // row_gather >= SUBLANE)

    if use_gather:
        TB = (budget - table_vmem) // row_gather
    else:
        TB = budget // row_stream
    TB = max(SUBLANE, min((TB // SUBLANE) * SUBLANE, _round_up(B, SUBLANE)))
    # Give the second v7x TensorCore work whenever the batch allows two tiles.
    if B >= 2 * SUBLANE and _round_up(B, TB) // TB < 2:
        TB = _round_up(B, 2 * SUBLANE) // 2
    Bp = _round_up(B, TB)
    if Bp != B:
        ids = jnp.pad(ids, ((0, Bp - B), (0, 0)))   # pad rows = all pad tokens

    scores = tw[ids].reshape(Bp, 1, L)              # [Bp, 1, L] f32 (4 B/token)
    scale3 = scale.reshape(1, 1, L)
    shift3 = shift.reshape(1, 1, L)

    grid = (Bp // TB,)
    cparams = pltpu.CompilerParams(
        dimension_semantics=("parallel",),
        vmem_limit_bytes=int(vmem_limit))
    scores_spec = pl.BlockSpec((TB, 1, L), lambda i: (i, 0, 0))
    resident_l = pl.BlockSpec((1, 1, L), lambda i: (0, 0, 0))
    out_spec = pl.BlockSpec((TB, 1, E), lambda i: (i, 0, 0))
    out_shape = jax.ShapeDtypeStruct((Bp, 1, E), jnp.float32)

    if use_gather:
        table_pad = jnp.pad(table_aug, ((0, Vp - V), (0, 0)))   # [Vp, E+1]
        ids_flat = ids.reshape(Bp * L, 1)
        out = pl.pallas_call(
            _encoder_gather_kernel,
            out_shape=out_shape,
            grid=grid,
            in_specs=[
                pl.BlockSpec((TB * L, 1), lambda i: (i, 0)),    # token ids
                scores_spec, resident_l, resident_l,
                pl.BlockSpec((Vp, Ea), lambda i: (0, 0)),       # resident table
            ],
            out_specs=out_spec,
            compiler_params=cparams,
        )(ids_flat, scores, scale3, shift3, table_pad)
    else:
        # Large-vocab fallback: XLA gathers the un-padded bf16 augmented
        # embeddings once; the kernel streams them (block last dim = E+1).
        # TODO(synk): replace with an in-kernel DMA row gather
        # (scalar-prefetched ids + per-row async copies) to avoid
        # materializing [B, L, E+1] in HBM.
        emb_aug = table_aug[ids]                                # [Bp, L, E+1] bf16
        out = pl.pallas_call(
            _encoder_stream_kernel,
            out_shape=out_shape,
            grid=grid,
            in_specs=[
                scores_spec, resident_l, resident_l,
                pl.BlockSpec((TB, L, Ea), lambda i: (i, 0, 0)),
            ],
            out_specs=out_spec,
            compiler_params=cparams,
        )(scores, scale3, shift3, emb_aug)

    return out.reshape(Bp, E)[:B]           # L2-normalized means, [B, E]


def _cosine_sim(q_n, c_n):
    """q_n, c_n already L2-normalized -> tiled matmul contracting K = E."""
    Bq, E = q_n.shape
    Bc, _ = c_n.shape
    TM = 256 if Bq > 256 else _round_up(Bq, SUBLANE)
    TN = 256 if Bc > 256 else _round_up(Bc, LANE)   # lane-dense output stores
    Bqp = _round_up(Bq, TM)
    Bcp = _round_up(Bc, TN)
    q = jnp.pad(q_n, ((0, Bqp - Bq), (0, 0)))
    c = jnp.pad(c_n, ((0, Bcp - Bc), (0, 0)))
    out = pl.pallas_call(
        _cosine_sim_kernel,
        out_shape=jax.ShapeDtypeStruct((Bqp, Bcp), jnp.float32),
        grid=(Bqp // TM, Bcp // TN),
        in_specs=[pl.BlockSpec((TM, E), lambda i, j: (i, 0)),
                  pl.BlockSpec((TN, E), lambda i, j: (j, 0))],
        out_specs=pl.BlockSpec((TM, TN), lambda i, j: (i, j)),
        compiler_params=pltpu.CompilerParams(
            dimension_semantics=("parallel", "parallel")),
    )(q, c)
    return out[:Bq, :Bc]


def code_search_forward(params, language_code_seqs, language_query_seqs):
    languages = params["languages"]
    query_seqs = jnp.concatenate(
        [language_query_seqs[l] for l in languages
         if language_query_seqs[l] is not None], axis=0)
    q_n = _encode(query_seqs, params["query"])
    # TODO(synk): fuse the per-language code towers into a single pallas_call
    # (scalar-prefetched per-language table / BN-parameter offsets) to drop
    # per-language launch overhead when many languages have small batches.
    code_n = jnp.concatenate(
        [_encode(language_code_seqs[l], params[l]) for l in languages
         if language_code_seqs[l] is not None], axis=0)
    # Cosine normalization already fused into the encoders.
    return _cosine_sim(q_n, code_n)


# ----------------------------------------------------------------------------
# Pure-JAX f32 reference of the PyTorch module (eval mode) for validation.
# ----------------------------------------------------------------------------
def _ref_forward(params, language_code_seqs, language_query_seqs):
    def encode(seqs, p):
        seqs = seqs.astype(jnp.int32)
        mask = (seqs != 0).astype(jnp.float32)[:, :, None]
        emb = p["emb"][seqs]
        s = emb @ p["w"]
        scale = p["gamma"] / jnp.sqrt(p["var"] + BN_EPS)
        x = (s - p["mean"]) * scale + p["beta"]
        w = jax.nn.sigmoid(x)[:, :, None] * mask
        num = jnp.sum(emb * w, axis=1)
        den = jnp.sum(w, axis=1) + SMALL_NUMBER
        return num / den

    languages = params["languages"]
    q = jnp.concatenate([language_query_seqs[l] for l in languages
                         if language_query_seqs[l] is not None], axis=0)
    qm = encode(q, params["query"])
    cm = jnp.concatenate([encode(language_code_seqs[l], params[l])
                          for l in languages
                          if language_code_seqs[l] is not None], axis=0)
    qn = qm / (jnp.linalg.norm(qm, axis=1, keepdims=True) + SMALL_NUMBER)
    cn = cm / (jnp.linalg.norm(cm, axis=1, keepdims=True) + SMALL_NUMBER)
    return qn @ cn.T


# ----------------------------------------------------------------------------
# Deterministic parameter construction (synthetic "checkpoint")
# ----------------------------------------------------------------------------
def _make_tower(key, vocab_size, seq_len, embedding_size):
    k_emb, k_w, k_g, k_b, k_m, k_v = jax.random.split(key, 6)
    emb = 0.1 * jax.random.normal(k_emb, (vocab_size, embedding_size), jnp.float32)
    emb = emb.at[0].set(0.0)  # padding_idx=0 row is zero
    return {
        "emb": emb,
        "w": 0.1 * jax.random.normal(k_w, (embedding_size,), jnp.float32),
        "gamma": 1.0 + 0.1 * jax.random.normal(k_g, (seq_len,), jnp.float32),
        "beta": 0.1 * jax.random.normal(k_b, (seq_len,), jnp.float32),
        "mean": 0.1 * jax.random.normal(k_m, (seq_len,), jnp.float32),
        "var": 0.5 + jax.random.uniform(k_v, (seq_len,), jnp.float32),
    }


def init_params(key, languages, embedding_size, code_vocabulary_size,
                code_seq_length, query_vocabulary_size, query_seq_length):
    keys = jax.random.split(key, len(languages) + 1)
    params = {"languages": list(languages)}
    for l, k in zip(languages, keys[:-1]):
        params[l] = _make_tower(k, code_vocabulary_size[l], code_seq_length,
                                embedding_size)
    params["query"] = _make_tower(keys[-1], query_vocabulary_size,
                                  query_seq_length, embedding_size)
    return params


# ----------------------------------------------------------------------------
if __name__ == "__main__":
    languages = ["python", "java"]
    embedding_size = 32
    code_vocabulary_size = {"python": 50, "java": 60}
    code_seq_length = 16
    query_vocabulary_size = 70
    query_seq_length = 8

    root = jax.random.PRNGKey(0)
    k_params, k_data = jax.random.split(root)
    params = init_params(k_params, languages, embedding_size,
                         code_vocabulary_size, code_seq_length,
                         query_vocabulary_size, query_seq_length)

    dkeys = jax.random.split(k_data, 4)
    language_code_seqs = {
        "python": jax.random.randint(dkeys[0], (3, code_seq_length), 0,
                                     code_vocabulary_size["python"], jnp.int32),
        "java": jax.random.randint(dkeys[1], (5, code_seq_length), 0,
                                   code_vocabulary_size["java"], jnp.int32),
    }
    language_query_seqs = {
        "python": jax.random.randint(dkeys[2], (3, query_seq_length), 0,
                                     query_vocabulary_size, jnp.int32),
        "java": jax.random.randint(dkeys[3], (5, query_seq_length), 0,
                                   query_vocabulary_size, jnp.int32),
    }

    sim = code_search_forward(params, language_code_seqs, language_query_seqs)
    sim = jax.block_until_ready(sim)
    assert sim.shape == (8, 8) and sim.dtype == jnp.float32
    assert bool(jnp.all(jnp.isfinite(sim)))

    # Both encoder paths (resident-table in-kernel gather vs streamed XLA
    # gather) must agree.
    query_seqs = jnp.concatenate([language_query_seqs[l] for l in languages],
                                 axis=0)
    enc_g = _encode(query_seqs, params["query"], force="gather")
    enc_s = _encode(query_seqs, params["query"], force="stream")
    assert bool(jnp.allclose(enc_g, enc_s, atol=1e-5, rtol=1e-5))

    # Validate against the pure-JAX f32 reference (bf16 table / weights in the
    # kernels -> loose tolerance).
    ref = _ref_forward(params, language_code_seqs, language_query_seqs)
    assert bool(jnp.allclose(sim, ref, atol=3e-2, rtol=0.0))

    print("KERNEL_OK")
</pallas_src>

<mosaic_0001>
module attributes {stable_mosaic.version = 11 : i64} {
  func.func @_encoder_gather_kernel(%arg0: i32, %arg1: memref<64x1xi32, #tpu.memory_space<vmem>>, %arg2: memref<8x1x8xf32, #tpu.memory_space<vmem>>, %arg3: memref<1x1x8xf32, #tpu.memory_space<vmem>>, %arg4: memref<1x1x8xf32, #tpu.memory_space<vmem>>, %arg5: memref<72x33xbf16, #tpu.memory_space<vmem>>, %arg6: memref<8x1x32xf32, #tpu.memory_space<vmem>>) attributes {dimension_semantics = [#tpu.dimension_semantics<parallel>], iteration_bounds = array<i64: 1>, scalar_prefetch = 0 : i64, scratch_operands = 0 : i64, tpu.core_type = #tpu.core_type<tc>, window_params = [{transform_indices = @transform_0, window_bounds = array<i64: 64, 1>}, {transform_indices = @transform_1, window_bounds = array<i64: 8, 1, 8>}, {pipeline_mode = #tpu.pipeline_mode<synchronous>, transform_indices = @transform_2, window_bounds = array<i64: 1, 1, 8>}, {pipeline_mode = #tpu.pipeline_mode<synchronous>, transform_indices = @transform_3, window_bounds = array<i64: 1, 1, 8>}, {pipeline_mode = #tpu.pipeline_mode<synchronous>, transform_indices = @transform_4, window_bounds = array<i64: 72, 33>}, {transform_indices = @transform_5, window_bounds = array<i64: 8, 1, 32>}]} {
    %c0 = arith.constant 0 : index
    %c0_0 = arith.constant 0 : index
    %0 = vector.load %arg1[%c0, %c0_0] : memref<64x1xi32, #tpu.memory_space<vmem>>, vector<64x1xi32>
    %1 = tpu.iota {dimensions = array<i32: 1>} : vector<64x72xi32>
    %2 = vector.broadcast %0 : vector<64x1xi32> to vector<64x72xi32>
    %3 = arith.cmpi eq, %2, %1 : vector<64x72xi32>
    %4 = arith.extui %3 : vector<64x72xi1> to vector<64x72xi32>
    %5 = arith.sitofp %4 : vector<64x72xi32> to vector<64x72xf32>
    %6 = arith.truncf %5 : vector<64x72xf32> to vector<64x72xbf16>
    %c0_1 = arith.constant 0 : index
    %c0_2 = arith.constant 0 : index
    %7 = vector.load %arg5[%c0_1, %c0_2] : memref<72x33xbf16, #tpu.memory_space<vmem>>, vector<72x33xbf16>
    %cst = arith.constant dense<0.000000e+00> : vector<64x33xf32>
    %8 = tpu.matmul %6, %7, %cst {dimension_numbers = #tpu.dot_dimension_numbers<[1], [0], [0], [1], [0, 0, 1, 1], [], []>} : vector<64x72xbf16>, vector<72x33xbf16>, vector<64x33xf32> -> vector<64x33xf32>
    %9 = arith.truncf %8 : vector<64x33xf32> to vector<64x33xbf16>
    %10 = vector.shape_cast %9 : vector<64x33xbf16> to vector<8x8x33xbf16>
    %c0_3 = arith.constant 0 : index
    %c0_4 = arith.constant 0 : index
    %c0_5 = arith.constant 0 : index
    %11 = vector.load %arg2[%c0_3, %c0_4, %c0_5] : memref<8x1x8xf32, #tpu.memory_space<vmem>>, vector<8x1x8xf32>
    %c0_6 = arith.constant 0 : index
    %c0_7 = arith.constant 0 : index
    %c0_8 = arith.constant 0 : index
    %12 = vector.load %arg3[%c0_6, %c0_7, %c0_8] : memref<1x1x8xf32, #tpu.memory_space<vmem>>, vector<1x1x8xf32>
    %c0_9 = arith.constant 0 : index
    %c0_10 = arith.constant 0 : index
    %c0_11 = arith.constant 0 : index
    %13 = vector.load %arg4[%c0_9, %c0_10, %c0_11] : memref<1x1x8xf32, #tpu.memory_space<vmem>>, vector<1x1x8xf32>
    %14 = vector.broadcast %12 : vector<1x1x8xf32> to vector<8x1x8xf32>
    %15 = arith.mulf %11, %14 : vector<8x1x8xf32>
    %16 = vector.broadcast %13 : vector<1x1x8xf32> to vector<8x1x8xf32>
    %17 = arith.addf %15, %16 : vector<8x1x8xf32>
    %18 = arith.negf %17 : vector<8x1x8xf32>
    %19 = math.exp %18 : vector<8x1x8xf32>
    %cst_12 = arith.constant 1.000000e+00 : f32
    %20 = vector.broadcast %cst_12 : f32 to vector<8x1x8xf32>
    %21 = arith.addf %20, %19 : vector<8x1x8xf32>
    %22 = arith.divf %20, %21 : vector<8x1x8xf32>
    %23 = arith.truncf %22 : vector<8x1x8xf32> to vector<8x1x8xbf16>
    "tpu.trace_start"() <{level = 10 : i32, message = "bql,ble->bqe"}> : () -> ()
    %cst_13 = arith.constant dense<0.000000e+00> : vector<8x1x33xf32>
    %24 = tpu.matmul %23, %10, %cst_13 {dimension_numbers = #tpu.dot_dimension_numbers<[2], [1], [1], [2], [0, 0, 0, 1, 1, 2], [0], [0]>} : vector<8x1x8xbf16>, vector<8x8x33xbf16>, vector<8x1x33xf32> -> vector<8x1x33xf32>
    "tpu.trace_stop"() : () -> ()
    %25 = vector.extract_strided_slice %24 {offsets = [0, 0, 0], sizes = [8, 1, 32], strides = [1, 1, 1]} : vector<8x1x33xf32> to vector<8x1x32xf32>
    %26 = vector.extract_strided_slice %24 {offsets = [0, 0, 32], sizes = [8, 1, 1], strides = [1, 1, 1]} : vector<8x1x33xf32> to vector<8x1x1xf32>
    %cst_14 = arith.constant 9.99999993E-9 : f32
    %27 = vector.broadcast %cst_14 : f32 to vector<8x1x1xf32>
    %28 = arith.addf %26, %27 : vector<8x1x1xf32>
    %29 = vector.broadcast %28 : vector<8x1x1xf32> to vector<8x1x32xf32>
    %30 = arith.divf %25, %29 : vector<8x1x32xf32>
    %31 = arith.mulf %30, %30 : vector<8x1x32xf32>
    %cst_15 = arith.constant dense<0.000000e+00> : vector<8x1xf32>
    %32 = vector.multi_reduction <add>, %31, %cst_15 [2] : vector<8x1x32xf32> to vector<8x1xf32>
    %33 = vector.shape_cast %32 : vector<8x1xf32> to vector<8x1x1xf32>
    %34 = math.sqrt %33 : vector<8x1x1xf32>
    %cst_16 = arith.constant 9.99999993E-9 : f32
    %35 = vector.broadcast %cst_16 : f32 to vector<8x1x1xf32>
    %36 = arith.addf %34, %35 : vector<8x1x1xf32>
    %37 = vector.broadcast %36 : vector<8x1x1xf32> to vector<8x1x32xf32>
    %38 = arith.divf %30, %37 : vector<8x1x32xf32>
    %c0_17 = arith.constant 0 : index
    %c0_18 = arith.constant 0 : index
    %c0_19 = arith.constant 0 : index
    %39 = vector.load %arg6[%c0_17, %c0_18, %c0_19] : memref<8x1x32xf32, #tpu.memory_space<vmem>>, vector<8x1x32xf32>
    tpu.vector_store %arg6[%c0_17, %c0_18, %c0_19], %38 {strides = array<i32>} : memref<8x1x32xf32, #tpu.memory_space<vmem>>, vector<8x1x32xf32>,
    return
  }
  func.func @transform_0(%arg0: i32) -> (i32, i32) {
    %c0_i32 = arith.constant 0 : i32
    %c0_i32_0 = arith.constant 0 : i32
    return %arg0, %c0_i32 : i32, i32
  }
  func.func @transform_1(%arg0: i32) -> (i32, i32, i32) {
    %c0_i32 = arith.constant 0 : i32
    %c0_i32_0 = arith.constant 0 : i32
    %c0_i32_1 = arith.constant 0 : i32
    return %arg0, %c0_i32, %c0_i32_0 : i32, i32, i32
  }
  func.func @transform_2(%arg0: i32) -> (i32, i32, i32) {
    %c0_i32 = arith.constant 0 : i32
    %c0_i32_0 = arith.constant 0 : i32
    %c0_i32_1 = arith.constant 0 : i32
    %c0_i32_2 = arith.constant 0 : i32
    return %c0_i32, %c0_i32_0, %c0_i32_1 : i32, i32, i32
  }
  func.func @transform_3(%arg0: i32) -> (i32, i32, i32) {
    %c0_i32 = arith.constant 0 : i32
    %c0_i32_0 = arith.constant 0 : i32
    %c0_i32_1 = arith.constant 0 : i32
    %c0_i32_2 = arith.constant 0 : i32
    return %c0_i32, %c0_i32_0, %c0_i32_1 : i32, i32, i32
  }
  func.func @transform_4(%arg0: i32) -> (i32, i32) {
    %c0_i32 = arith.constant 0 : i32
    %c0_i32_0 = arith.constant 0 : i32
    %c0_i32_1 = arith.constant 0 : i32
    return %c0_i32, %c0_i32_0 : i32, i32
  }
  func.func @transform_5(%arg0: i32) -> (i32, i32, i32) {
    %c0_i32 = arith.constant 0 : i32
    %c0_i32_0 = arith.constant 0 : i32
    %c0_i32_1 = arith.constant 0 : i32
    return %arg0, %c0_i32, %c0_i32_0 : i32, i32, i32
  }
}

</mosaic_0001>

<llo_original>
// kernel: tpu_custom_call.1
$region0: #{tpu_custom_call.1}
  #allocation0 [shape = 'u32[]', space=smem, size = 0x4, offset = 0x4, fixed_abs, tag = 'smem constant byte address 0x4 - core index']
  #allocation1 [shape = 'u32[144,128]{1,0:T(1,128)}', space=vmem, size = 0x12000, scoped, tag = 'internal scratch']
  %s0 = inlined_call_operand.vmem [shape: s32[64,1], index: 0, kind: input, shape index: {}]
  %s1 = inlined_call_operand.vmem [shape: f32[8,1,8], index: 1, kind: input, shape index: {}]
  %s2 = inlined_call_operand.vmem [shape: f32[1,1,8], index: 2, kind: input, shape index: {}]
  %s3 = inlined_call_operand.vmem [shape: f32[1,1,8], index: 3, kind: input, shape index: {}]
  %s4 = inlined_call_operand.vmem [shape: bf16[72,33], index: 4, kind: input, shape index: {}]
  %s5 = inlined_call_operand.hbm [shape: f32[8,1,32], index: 5, kind: output, shape index: {}]
  %s6 = sld [smem:[#allocation0]]
  $region30: #{tpu_custom_call.1} parent=0
    _
  %s8 = ssub.s32 1, %s6
  %s9 = scalar_select 0, %s8, %s6
  $region1: #{tpu_custom_call.1} parent=0
    #allocation2 [shape = 'u8[4096]{0}', space=vmem, size = 0x1000, scoped, tag = 'output window, operand 0, single buffered']
    #allocation3 [shape = 's32[1]{0}', space=sflag, size = 0x4, scoped, tag = 'scoped memory for tpu_custom_call.1']
    %10 = vsyncpa [#allocation3], 0
    // Predicated region
    $region2: #{tpu_custom_call.1} parent=1 // pred_check
      _
    $region3: #{tpu_custom_call.1} parent=1 // pred_check_branch
      %12 = sbr.rel (0) target = $region5
    $region4: #{tpu_custom_call.1} parent=1 // pred_region
      _
    $region5: #{tpu_custom_call.1} parent=1 // pred_fallthru
      _
    // Predicated region
    $region6: #{tpu_custom_call.1} parent=1 // pred_check
      _
    $region7: #{tpu_custom_call.1} parent=1 // pred_check_branch
      %14 = sbr.rel (0) target = $region9
    $region8: #{tpu_custom_call.1} parent=1 // pred_region
      _
    $region9: #{tpu_custom_call.1} parent=1 // pred_fallthru
      _
    // Predicated region
    $region10: #{tpu_custom_call.1} parent=1 // pred_check
      _
    $region11: #{tpu_custom_call.1} parent=1 // pred_check_branch
      %16 = sbr.rel (0) target = $region13
    $region12: #{tpu_custom_call.1} parent=1 // pred_region
      _
    $region13: #{tpu_custom_call.1} parent=1 // pred_fallthru
      _
    // Predicated region
    $region14: #{tpu_custom_call.1} parent=1 // pred_check
      _
    $region15: #{tpu_custom_call.1} parent=1 // pred_check_branch
      %18 = sbr.rel (0) target = $region17
    $region16: #{tpu_custom_call.1} parent=1 // pred_region
      _
    $region17: #{tpu_custom_call.1} parent=1 // pred_fallthru
      _
    // Predicated region
    $region18: #{tpu_custom_call.1} parent=1 // pred_check
      _
    $region19: #{tpu_custom_call.1} parent=1 // pred_check_branch
      %20 = sbr.rel (0) target = $region21
    $region20: #{tpu_custom_call.1} parent=1 // pred_region
      _
    $region21: #{tpu_custom_call.1} parent=1 // pred_fallthru
      _
    %v22 = vld [vmem:[%s0] sm:$0xff]
    %v23 = vld [vmem:[%s0 + $0x8] sm:$0xff]
    %v24 = vld [vmem:[%s0 + $0x10] sm:$0xff]
    %v25 = vld [vmem:[%s0 + $0x18] sm:$0xff]
    %v26 = vld [vmem:[%s0 + $0x20] sm:$0xff]
    %v27 = vld [vmem:[%s0 + $0x28] sm:$0xff]
    %v28 = vld [vmem:[%s0 + $0x30] sm:$0xff]
    %v29 = vld [vmem:[%s0 + $0x38] sm:$0xff]
    %v30 = vlaneseq
    %v31 = vand.u32 %v30, 127
    %32 = vset.pattern.permute.xlu0 0
    %33 = vperm.xlu0 %32, %v22
    %v34 = vpop.permute.xlu0 %33
    %35 = vset.pattern.permute.xlu0 0
    %36 = vperm.xlu0 %35, %v23
    %v37 = vpop.permute.xlu0 %36
    %38 = vset.pattern.permute.xlu0 0
    %39 = vperm.xlu0 %38, %v24
    %v40 = vpop.permute.xlu0 %39
    %41 = vset.pattern.permute.xlu0 0
    %42 = vperm.xlu0 %41, %v25
    %v43 = vpop.permute.xlu0 %42
    %44 = vset.pattern.permute.xlu0 0
    %45 = vperm.xlu0 %44, %v26
    %v46 = vpop.permute.xlu0 %45
    %47 = vset.pattern.permute.xlu0 0
    %48 = vperm.xlu0 %47, %v27
    %v49 = vpop.permute.xlu0 %48
    %50 = vset.pattern.permute.xlu0 0
    %51 = vperm.xlu0 %50, %v28
    %v52 = vpop.permute.xlu0 %51
    %53 = vset.pattern.permute.xlu0 0
    %54 = vperm.xlu0 %53, %v29
    %v55 = vpop.permute.xlu0 %54
    %vm56 = vcmp.eq.s32.totalorder %v34, %v31
    %vm57 = vcmp.eq.s32.totalorder %v37, %v31
    %vm58 = vcmp.eq.s32.totalorder %v40, %v31
    %vm59 = vcmp.eq.s32.totalorder %v43, %v31
    %vm60 = vcmp.eq.s32.totalorder %v46, %v31
    %vm61 = vcmp.eq.s32.totalorder %v49, %v31
    %vm62 = vcmp.eq.s32.totalorder %v52, %v31
    %vm63 = vcmp.eq.s32.totalorder %v55, %v31
    %v64 = vsel %vm56, 1, 0
    %v65 = vsel %vm57, 1, 0
    %v66 = vsel %vm58, 1, 0
    %v67 = vsel %vm59, 1, 0
    %v68 = vsel %vm60, 1, 0
    %v69 = vsel %vm61, 1, 0
    %v70 = vsel %vm62, 1, 0
    %v71 = vsel %vm63, 1, 0
    %v72 = vcvt.s32.f32 %v64
    %v73 = vcvt.s32.f32 %v65
    %v74 = vcvt.s32.f32 %v66
    %v75 = vcvt.s32.f32 %v67
    %v76 = vcvt.s32.f32 %v68
    %v77 = vcvt.s32.f32 %v69
    %v78 = vcvt.s32.f32 %v70
    %v79 = vcvt.s32.f32 %v71
    %v80 = vpack.c.bf16 %v73, %v72
    %v81 = vpack.c.bf16 %v75, %v74
    %v82 = vpack.c.bf16 %v77, %v76
    %v83 = vpack.c.bf16 %v79, %v78
    %v84 = vld [vmem:[%s4] sm:$0xf]
    %v85 = vld [vmem:[%s4 + $0x4] sm:$0xf]
    %v86 = vld [vmem:[%s4 + $0x8] sm:$0xf]
    %v87 = vld [vmem:[%s4 + $0xc] sm:$0xf]
    %v88 = vld [vmem:[%s4 + $0x10] sm:$0xf]
    %v89 = vld [vmem:[%s4 + $0x14] sm:$0xf]
    %v90 = vld [vmem:[%s4 + $0x18] sm:$0xf]
    %v91 = vld [vmem:[%s4 + $0x1c] sm:$0xf]
    %v92 = vld [vmem:[%s4 + $0x20] sm:$0xf]
    %v102 = vunpack.c.l.b16 %v84
    %v103 = vunpack.c.l.b16 %v85
    %v104 = vunpack.c.l.b16 %v86
    %v105 = vunpack.c.l.b16 %v87
    %v106 = vunpack.c.l.b16 %v88
    %v107 = vunpack.c.l.b16 %v89
    %v108 = vunpack.c.l.b16 %v90
    %v109 = vunpack.c.l.b16 %v91
    %v110 = vunpack.c.l.b16 %v92
    %v111 = vpack.c.b16 %v103, %v102
    %v112 = vpack.c.b16 %v105, %v104
    %v113 = vpack.c.b16 %v107, %v106
    %v114 = vpack.c.b16 %v109, %v108
    %v115 = vpack.c.b16 %v110, %v110
    %vm120 = vcmask 588800
    %v122 = vsel %vm120, %v80, 0
    %v125 = vsel %vm120, %v81, 0
    %v128 = vsel %vm120, %v82, 0
    %v131 = vsel %vm120, %v83, 0
    %vm133 = vcmask 1043456
    %v135 = vsel %vm133, %v115, 0
    %137 = vmatprep.subr.bf16.mxu0 0
    %138 = vmatpush1.bf16.msra.mxu0 0
    %139 = vmatprep.subr.bf16.mxu0 0
    %140 = vmatpush1.bf16.msra.mxu0 0
    %141 = vmatprep.subr.bf16.mxu0 0
    %142 = vmatpush1.bf16.msra.mxu0 0
    %143 = vmatprep.subr.bf16.mxu0 0
    %144 = vmatpush1.bf16.msra.mxu0 %v135
    %145 = vmatprep.subr.bf16.mxu0 0
    %146 = vmatpush1.bf16.msra.mxu0 %v114
    %147 = vmatprep.subr.bf16.mxu0 0
    %148 = vmatpush1.bf16.msra.mxu0 %v113
    %149 = vmatprep.subr.bf16.mxu0 0
    %150 = vmatpush1.bf16.msra.mxu0 %v112
    %151 = vmatprep.subr.bf16.mxu0 0
    %152 = vmatpush1.bf16.msra.mxu0 %v111
    %153 = vmatprep.subr.bf16.mxu0 0
    %154 = vmatpush2.bf16.msra.mxu0 0
    %155 = vmatprep.subr.bf16.mxu0 0
    %156 = vmatpush2.bf16.msra.mxu0 0
    %157 = vmatprep.subr.bf16.mxu0 0
    %158 = vmatpush2.bf16.msra.mxu0 0
    %159 = vmatprep.subr.bf16.mxu0 0
    %160 = vmatpush2.bf16.msra.mxu0 0
    %161 = vmatprep.subr.bf16.mxu0 0
    %162 = vmatpush2.bf16.msra.mxu0 0
    %163 = vmatprep.subr.bf16.mxu0 0
    %164 = vmatpush2.bf16.msra.mxu0 0
    %165 = vmatprep.subr.bf16.mxu0 0
    %166 = vmatpush2.bf16.msra.mxu0 0
    %167 = vmatprep.subr.bf16.mxu0 0
    %168 = vmatpush2.bf16.msra.mxu0 0
    %169 = vmatprep.mubr.bf16.mxu0 0
    %170 = vmatmul.mubr.bf16.gmra.mxu0 %v122
    %v171 = vpop.f32.mrf.mxu0
    %v172 = vadd.f32 0.0, %v171
    %v173 = vpop.f32.mrf.mxu0
    %v174 = vpop.f32.mrf.mxu0
    %v175 = vadd.f32 0.0, %v174
    %v176 = vpop.f32.mrf.mxu0
    %177 = vmatprep.mubr.bf16.mxu0 0
    %178 = vmatmul.mubr.bf16.gmra.mxu0 %v125
    %v179 = vpop.f32.mrf.mxu0
    %v180 = vadd.f32 0.0, %v179
    %v181 = vpop.f32.mrf.mxu0
    %v182 = vpop.f32.mrf.mxu0
    %v183 = vadd.f32 0.0, %v182
    %v184 = vpop.f32.mrf.mxu0
    %185 = vmatprep.mubr.bf16.mxu0 0
    %186 = vmatmul.mubr.bf16.gmra.mxu0 %v128
    %v187 = vpop.f32.mrf.mxu0
    %v188 = vadd.f32 0.0, %v187
    %v189 = vpop.f32.mrf.mxu0
    %v190 = vpop.f32.mrf.mxu0
    %v191 = vadd.f32 0.0, %v190
    %v192 = vpop.f32.mrf.mxu0
    %193 = vmatprep.mubr.bf16.mxu0 0
    %194 = vmatmul.mubr.bf16.gmra.mxu0 %v131
    %v195 = vpop.f32.mrf.mxu0
    %v196 = vadd.f32 0.0, %v195
    %v197 = vpop.f32.mrf.mxu0
    %v198 = vpop.f32.mrf.mxu0
    %v199 = vadd.f32 0.0, %v198
    %v200 = vpop.f32.mrf.mxu0
    %201 = vdwg.mxu0
    %v202 = vpack.c.bf16 %v175, %v172
    %v203 = vpack.c.bf16 %v183, %v180
    %v204 = vpack.c.bf16 %v191, %v188
    %v205 = vpack.c.bf16 %v199, %v196
    %v210 = vunpack.c.l.b16 %v202
    %v211 = vunpack.c.h.b16 %v202
    %v212 = vunpack.c.l.b16 %v203
    %v213 = vunpack.c.h.b16 %v203
    %v214 = vunpack.c.l.b16 %v204
    %v215 = vunpack.c.h.b16 %v204
    %v216 = vunpack.c.l.b16 %v205
    %v217 = vunpack.c.h.b16 %v205
    %v218 = vpack.c.b16 %v210, %v210
    %v219 = vpack.c.b16 %v211, %v211
    %v220 = vpack.c.b16 %v212, %v212
    %v221 = vpack.c.b16 %v213, %v213
    %v222 = vpack.c.b16 %v214, %v214
    %v223 = vpack.c.b16 %v215, %v215
    %v224 = vpack.c.b16 %v216, %v216
    %v225 = vpack.c.b16 %v217, %v217
    %v226 = vld [vmem:[%s1] sm:$0x1]
    %v227 = vld [vmem:[%s1 + $0x1] sm:$0x1]
    %v228 = vld [vmem:[%s1 + $0x2] sm:$0x1]
    %v229 = vld [vmem:[%s1 + $0x3] sm:$0x1]
    %v230 = vld [vmem:[%s1 + $0x4] sm:$0x1]
    %v231 = vld [vmem:[%s1 + $0x5] sm:$0x1]
    %v232 = vld [vmem:[%s1 + $0x6] sm:$0x1]
    %v233 = vld [vmem:[%s1 + $0x7] sm:$0x1]
    %v234 = vld [vmem:[%s2] sm:$0x1]
    %v235 = vld [vmem:[%s3] sm:$0x1]
    %v236 = vmul.f32 %v226, %v234
    %v237 = vmul.f32 %v227, %v234
    %v238 = vmul.f32 %v228, %v234
    %v239 = vmul.f32 %v229, %v234
    %v240 = vmul.f32 %v230, %v234
    %v241 = vmul.f32 %v231, %v234
    %v242 = vmul.f32 %v232, %v234
    %v243 = vmul.f32 %v233, %v234
    %v244 = vadd.f32 %v236, %v235
    %v245 = vadd.f32 %v237, %v235
    %v246 = vadd.f32 %v238, %v235
    %v247 = vadd.f32 %v239, %v235
    %v248 = vadd.f32 %v240, %v235
    %v249 = vadd.f32 %v241, %v235
    %v250 = vadd.f32 %v242, %v235
    %v251 = vadd.f32 %v243, %v235
    %v252 = vxor.u32 %v244, 2147483648
    %v253 = vxor.u32 %v245, 2147483648
    %v254 = vxor.u32 %v246, 2147483648
    %v255 = vxor.u32 %v247, 2147483648
    %v256 = vxor.u32 %v248, 2147483648
    %v257 = vxor.u32 %v249, 2147483648
    %v258 = vxor.u32 %v250, 2147483648
    %v259 = vxor.u32 %v251, 2147483648
    %v260 = vmul.f32 %v252, 1.442695
    %v261 = vpow.pop %v260
    %v262 = vmul.f32 %v253, 1.442695
    %v263 = vpow.pop %v262
    %v264 = vmul.f32 %v254, 1.442695
    %v265 = vpow.pop %v264
    %v266 = vmul.f32 %v255, 1.442695
    %v267 = vpow.pop %v266
    %v268 = vmul.f32 %v256, 1.442695
    %v269 = vpow.pop %v268
    %v270 = vmul.f32 %v257, 1.442695
    %v271 = vpow.pop %v270
    %v272 = vmul.f32 %v258, 1.442695
    %v273 = vpow.pop %v272
    %v274 = vmul.f32 %v259, 1.442695
    %v275 = vpow.pop %v274
    %v276 = vadd.f32 %v261, 1.0
    %v277 = vadd.f32 %v263, 1.0
    %v278 = vadd.f32 %v265, 1.0
    %v279 = vadd.f32 %v267, 1.0
    %v280 = vadd.f32 %v269, 1.0
    %v281 = vadd.f32 %v271, 1.0
    %v282 = vadd.f32 %v273, 1.0
    %v283 = vadd.f32 %v275, 1.0
    %v284 = vrcp.pop %v276
    %v285 = vmul.f32 1.0, %v284
    %v286 = vrcp.pop %v277
    %v287 = vmul.f32 1.0, %v286
    %v288 = vrcp.pop %v278
    %v289 = vmul.f32 1.0, %v288
    %v290 = vrcp.pop %v279
    %v291 = vmul.f32 1.0, %v290
    %v292 = vrcp.pop %v280
    %v293 = vmul.f32 1.0, %v292
    %v294 = vrcp.pop %v281
    %v295 = vmul.f32 1.0, %v294
    %v296 = vrcp.pop %v282
    %v297 = vmul.f32 1.0, %v296
    %v298 = vrcp.pop %v283
    %v299 = vmul.f32 1.0, %v298
    %v300 = vpack.c.bf16 %v285, %v285
    %v301 = vpack.c.bf16 %v287, %v287
    %v302 = vpack.c.bf16 %v289, %v289
    %v303 = vpack.c.bf16 %v291, %v291
    %v304 = vpack.c.bf16 %v293, %v293
    %v305 = vpack.c.bf16 %v295, %v295
    %v306 = vpack.c.bf16 %v297, %v297
    %v307 = vpack.c.bf16 %v299, %v299
    %vm308 = vcmask 64512
    %v310 = vsel %vm308, %v300, 0
    %v313 = vsel %vm133, %v218, 0
    %315 = vmatprep.subr.bf16.mxu0 0
    %316 = vmatpush1.bf16.msra.mxu0 0
    %317 = vmatprep.subr.bf16.mxu0 0
    %318 = vmatpush1.bf16.msra.mxu0 0
    %319 = vmatprep.subr.bf16.mxu0 0
    %320 = vmatpush1.bf16.msra.mxu0 0
    %321 = vmatprep.subr.bf16.mxu0 0
    %322 = vmatpush1.bf16.msra.mxu0 0
    %323 = vmatprep.subr.bf16.mxu0 0
    %324 = vmatpush1.bf16.msra.mxu0 0
    %325 = vmatprep.subr.bf16.mxu0 0
    %326 = vmatpush1.bf16.msra.mxu0 0
    %327 = vmatprep.subr.bf16.mxu0 0
    %328 = vmatpush1.bf16.msra.mxu0 0
    %329 = vmatprep.subr.bf16.mxu0 0
    %330 = vmatpush1.bf16.msra.mxu0 %v313
    %331 = vmatprep.subr.bf16.mxu0 0
    %332 = vmatpush2.bf16.msra.mxu0 0
    %333 = vmatprep.subr.bf16.mxu0 0
    %334 = vmatpush2.bf16.msra.mxu0 0
    %335 = vmatprep.subr.bf16.mxu0 0
    %336 = vmatpush2.bf16.msra.mxu0 0
    %337 = vmatprep.subr.bf16.mxu0 0
    %338 = vmatpush2.bf16.msra.mxu0 0
    %339 = vmatprep.subr.bf16.mxu0 0
    %340 = vmatpush2.bf16.msra.mxu0 0
    %341 = vmatprep.subr.bf16.mxu0 0
    %342 = vmatpush2.bf16.msra.mxu0 0
    %343 = vmatprep.subr.bf16.mxu0 0
    %344 = vmatpush2.bf16.msra.mxu0 0
    %345 = vmatprep.subr.bf16.mxu0 0
    %346 = vmatpush2.bf16.msra.mxu0 0
    %347 = vmatprep.mubr.bf16.mxu0 0
    %348 = vmatmul.mubr.bf16.gmra.mxu0 %v310
    %v349 = vpop.f32.mrf.mxu0
    %v350 = vadd.f32 0.0, %v349
    %v351 = vpop.f32.mrf.mxu0
    %v352 = vpop.f32.mrf.mxu0
    %v353 = vpop.f32.mrf.mxu0
    %354 = vdwg.mxu0
    %v356 = vsel %vm308, %v301, 0
    %v359 = vsel %vm133, %v219, 0
    %361 = vmatprep.subr.bf16.mxu0 0
    %362 = vmatpush1.bf16.msra.mxu0 0
    %363 = vmatprep.subr.bf16.mxu0 0
    %364 = vmatpush1.bf16.msra.mxu0 0
    %365 = vmatprep.subr.bf16.mxu0 0
    %366 = vmatpush1.bf16.msra.mxu0 0
    %367 = vmatprep.subr.bf16.mxu0 0
    %368 = vmatpush1.bf16.msra.mxu0 0
    %369 = vmatprep.subr.bf16.mxu0 0
    %370 = vmatpush1.bf16.msra.mxu0 0
    %371 = vmatprep.subr.bf16.mxu0 0
    %372 = vmatpush1.bf16.msra.mxu0 0
    %373 = vmatprep.subr.bf16.mxu0 0
    %374 = vmatpush1.bf16.msra.mxu0 0
    %375 = vmatprep.subr.bf16.mxu0 0
    %376 = vmatpush1.bf16.msra.mxu0 %v359
    %377 = vmatprep.subr.bf16.mxu0 0
    %378 = vmatpush2.bf16.msra.mxu0 0
    %379 = vmatprep.subr.bf16.mxu0 0
    %380 = vmatpush2.bf16.msra.mxu0 0
    %381 = vmatprep.subr.bf16.mxu0 0
    %382 = vmatpush2.bf16.msra.mxu0 0
    %383 = vmatprep.subr.bf16.mxu0 0
    %384 = vmatpush2.bf16.msra.mxu0 0
    %385 = vmatprep.subr.bf16.mxu0 0
    %386 = vmatpush2.bf16.msra.mxu0 0
    %387 = vmatprep.subr.bf16.mxu0 0
    %388 = vmatpush2.bf16.msra.mxu0 0
    %389 = vmatprep.subr.bf16.mxu0 0
    %390 = vmatpush2.bf16.msra.mxu0 0
    %391 = vmatprep.subr.bf16.mxu0 0
    %392 = vmatpush2.bf16.msra.mxu0 0
    %393 = vmatprep.mubr.bf16.mxu0 0
    %394 = vmatmul.mubr.bf16.gmra.mxu0 %v356
    %v395 = vpop.f32.mrf.mxu0
    %v396 = vadd.f32 0.0, %v395
    %v397 = vpop.f32.mrf.mxu0
    %v398 = vpop.f32.mrf.mxu0
    %v399 = vpop.f32.mrf.mxu0
    %400 = vdwg.mxu0
    %v402 = vsel %vm308, %v302, 0
    %v405 = vsel %vm133, %v220, 0
    %407 = vmatprep.subr.bf16.mxu0 0
    %408 = vmatpush1.bf16.msra.mxu0 0
    %409 = vmatprep.subr.bf16.mxu0 0
    %410 = vmatpush1.bf16.msra.mxu0 0
    %411 = vmatprep.subr.bf16.mxu0 0
    %412 = vmatpush1.bf16.msra.mxu0 0
    %413 = vmatprep.subr.bf16.mxu0 0
    %414 = vmatpush1.bf16.msra.mxu0 0
    %415 = vmatprep.subr.bf16.mxu0 0
    %416 = vmatpush1.bf16.msra.mxu0 0
    %417 = vmatprep.subr.bf16.mxu0 0
    %418 = vmatpush1.bf16.msra.mxu0 0
    %419 = vmatprep.subr.bf16.mxu0 0
    %420 = vmatpush1.bf16.msra.mxu0 0
    %421 = vmatprep.subr.bf16.mxu0 0
    %422 = vmatpush1.bf16.msra.mxu0 %v405
    %423 = vmatprep.subr.bf16.mxu0 0
    %424 = vmatpush2.bf16.msra.mxu0 0
    %425 = vmatprep.subr.bf16.mxu0 0
    %426 = vmatpush2.bf16.msra.mxu0 0
    %427 = vmatprep.subr.bf16.mxu0 0
    %428 = vmatpush2.bf16.msra.mxu0 0
    %429 = vmatprep.subr.bf16.mxu0 0
    %430 = vmatpush2.bf16.msra.mxu0 0
    %431 = vmatprep.subr.bf16.mxu0 0
    %432 = vmatpush2.bf16.msra.mxu0 0
    %433 = vmatprep.subr.bf16.mxu0 0
    %434 = vmatpush2.bf16.msra.mxu0 0
    %435 = vmatprep.subr.bf16.mxu0 0
    %436 = vmatpush2.bf16.msra.mxu0 0
    %437 = vmatprep.subr.bf16.mxu0 0
    %438 = vmatpush2.bf16.msra.mxu0 0
    %439 = vmatprep.mubr.bf16.mxu0 0
    %440 = vmatmul.mubr.bf16.gmra.mxu0 %v402
    %v441 = vpop.f32.mrf.mxu0
    %v442 = vadd.f32 0.0, %v441
    %v443 = vpop.f32.mrf.mxu0
    %v444 = vpop.f32.mrf.mxu0
    %v445 = vpop.f32.mrf.mxu0
    %446 = vdwg.mxu0
    %v448 = vsel %vm308, %v303, 0
    %v451 = vsel %vm133, %v221, 0
    %453 = vmatprep.subr.bf16.mxu0 0
    %454 = vmatpush1.bf16.msra.mxu0 0
    %455 = vmatprep.subr.bf16.mxu0 0
    %456 = vmatpush1.bf16.msra.mxu0 0
    %457 = vmatprep.subr.bf16.mxu0 0
    %458 = vmatpush1.bf16.msra.mxu0 0
    %459 = vmatprep.subr.bf16.mxu0 0
    %460 = vmatpush1.bf16.msra.mxu0 0
    %461 = vmatprep.subr.bf16.mxu0 0
    %462 = vmatpush1.bf16.msra.mxu0 0
    %463 = vmatprep.subr.bf16.mxu0 0
    %464 = vmatpush1.bf16.msra.mxu0 0
    %465 = vmatprep.subr.bf16.mxu0 0
    %466 = vmatpush1.bf16.msra.mxu0 0
    %467 = vmatprep.subr.bf16.mxu0 0
    %468 = vmatpush1.bf16.msra.mxu0 %v451
    %469 = vmatprep.subr.bf16.mxu0 0
    %470 = vmatpush2.bf16.msra.mxu0 0
    %471 = vmatprep.subr.bf16.mxu0 0
    %472 = vmatpush2.bf16.msra.mxu0 0
    %473 = vmatprep.subr.bf16.mxu0 0
    %474 = vmatpush2.bf16.msra.mxu0 0
    %475 = vmatprep.subr.bf16.mxu0 0
    %476 = vmatpush2.bf16.msra.mxu0 0
    %477 = vmatprep.subr.bf16.mxu0 0
    %478 = vmatpush2.bf16.msra.mxu0 0
    %479 = vmatprep.subr.bf16.mxu0 0
    %480 = vmatpush2.bf16.msra.mxu0 0
    %481 = vmatprep.subr.bf16.mxu0 0
    %482 = vmatpush2.bf16.msra.mxu0 0
    %483 = vmatprep.subr.bf16.mxu0 0
    %484 = vmatpush2.bf16.msra.mxu0 0
    %485 = vmatprep.mubr.bf16.mxu0 0
    %486 = vmatmul.mubr.bf16.gmra.mxu0 %v448
    %v487 = vpop.f32.mrf.mxu0
    %v488 = vadd.f32 0.0, %v487
    %v489 = vpop.f32.mrf.mxu0
    %v490 = vpop.f32.mrf.mxu0
    %v491 = vpop.f32.mrf.mxu0
    %492 = vdwg.mxu0
    %v494 = vsel %vm308, %v304, 0
    %v497 = vsel %vm133, %v222, 0
    %499 = vmatprep.subr.bf16.mxu0 0
    %500 = vmatpush1.bf16.msra.mxu0 0
    %501 = vmatprep.subr.bf16.mxu0 0
    %502 = vmatpush1.bf16.msra.mxu0 0
    %503 = vmatprep.subr.bf16.mxu0 0
    %504 = vmatpush1.bf16.msra.mxu0 0
    %505 = vmatprep.subr.bf16.mxu0 0
    %506 = vmatpush1.bf16.msra.mxu0 0
    %507 = vmatprep.subr.bf16.mxu0 0
    %508 = vmatpush1.bf16.msra.mxu0 0
    %509 = vmatprep.subr.bf16.mxu0 0
    %510 = vmatpush1.bf16.msra.mxu0 0
    %511 = vmatprep.subr.bf16.mxu0 0
    %512 = vmatpush1.bf16.msra.mxu0 0
    %513 = vmatprep.subr.bf16.mxu0 0
    %514 = vmatpush1.bf16.msra.mxu0 %v497
    %515 = vmatprep.subr.bf16.mxu0 0
    %516 = vmatpush2.bf16.msra.mxu0 0
    %517 = vmatprep.subr.bf16.mxu0 0
    %518 = vmatpush2.bf16.msra.mxu0 0
    %519 = vmatprep.subr.bf16.mxu0 0
    %520 = vmatpush2.bf16.msra.mxu0 0
    %521 = vmatprep.subr.bf16.mxu0 0
    %522 = vmatpush2.bf16.msra.mxu0 0
    %523 = vmatprep.subr.bf16.mxu0 0
    %524 = vmatpush2.bf16.msra.mxu0 0
    %525 = vmatprep.subr.bf16.mxu0 0
    %526 = vmatpush2.bf16.msra.mxu0 0
    %527 = vmatprep.subr.bf16.mxu0 0
    %528 = vmatpush2.bf16.msra.mxu0 0
    %529 = vmatprep.subr.bf16.mxu0 0
    %530 = vmatpush2.bf16.msra.mxu0 0
    %531 = vmatprep.mubr.bf16.mxu0 0
    %532 = vmatmul.mubr.bf16.gmra.mxu0 %v494
    %v533 = vpop.f32.mrf.mxu0
    %v534 = vadd.f32 0.0, %v533
    %v535 = vpop.f32.mrf.mxu0
    %v536 = vpop.f32.mrf.mxu0
    %v537 = vpop.f32.mrf.mxu0
    %538 = vdwg.mxu0
    %v540 = vsel %vm308, %v305, 0
    %v543 = vsel %vm133, %v223, 0
    %545 = vmatprep.subr.bf16.mxu0 0
    %546 = vmatpush1.bf16.msra.mxu0 0
    %547 = vmatprep.subr.bf16.mxu0 0
    %548 = vmatpush1.bf16.msra.mxu0 0
    %549 = vmatprep.subr.bf16.mxu0 0
    %550 = vmatpush1.bf16.msra.mxu0 0
    %551 = vmatprep.subr.bf16.mxu0 0
    %552 = vmatpush1.bf16.msra.mxu0 0
    %553 = vmatprep.subr.bf16.mxu0 0
    %554 = vmatpush1.bf16.msra.mxu0 0
    %555 = vmatprep.subr.bf16.mxu0 0
    %556 = vmatpush1.bf16.msra.mxu0 0
    %557 = vmatprep.subr.bf16.mxu0 0
    %558 = vmatpush1.bf16.msra.mxu0 0
    %559 = vmatprep.subr.bf16.mxu0 0
    %560 = vmatpush1.bf16.msra.mxu0 %v543
    %561 = vmatprep.subr.bf16.mxu0 0
    %562 = vmatpush2.bf16.msra.mxu0 0
    %563 = vmatprep.subr.bf16.mxu0 0
    %564 = vmatpush2.bf16.msra.mxu0 0
    %565 = vmatprep.subr.bf16.mxu0 0
    %566 = vmatpush2.bf16.msra.mxu0 0
    %567 = vmatprep.subr.bf16.mxu0 0
    %568 = vmatpush2.bf16.msra.mxu0 0
    %569 = vmatprep.subr.bf16.mxu0 0
    %570 = vmatpush2.bf16.msra.mxu0 0
    %571 = vmatprep.subr.bf16.mxu0 0
    %572 = vmatpush2.bf16.msra.mxu0 0
    %573 = vmatprep.subr.bf16.mxu0 0
    %574 = vmatpush2.bf16.msra.mxu0 0
    %575 = vmatprep.subr.bf16.mxu0 0
    %576 = vmatpush2.bf16.msra.mxu0 0
    %577 = vmatprep.mubr.bf16.mxu0 0
    %578 = vmatmul.mubr.bf16.gmra.mxu0 %v540
    %v579 = vpop.f32.mrf.mxu0
    %v580 = vadd.f32 0.0, %v579
    %v581 = vpop.f32.mrf.mxu0
    %v582 = vpop.f32.mrf.mxu0
    %v583 = vpop.f32.mrf.mxu0
    %584 = vdwg.mxu0
    %v586 = vsel %vm308, %v306, 0
    %v589 = vsel %vm133, %v224, 0
    %591 = vmatprep.subr.bf16.mxu0 0
    %592 = vmatpush1.bf16.msra.mxu0 0
    %593 = vmatprep.subr.bf16.mxu0 0
    %594 = vmatpush1.bf16.msra.mxu0 0
    %595 = vmatprep.subr.bf16.mxu0 0
    %596 = vmatpush1.bf16.msra.mxu0 0
    %597 = vmatprep.subr.bf16.mxu0 0
    %598 = vmatpush1.bf16.msra.mxu0 0
    %599 = vmatprep.subr.bf16.mxu0 0
    %600 = vmatpush1.bf16.msra.mxu0 0
    %601 = vmatprep.subr.bf16.mxu0 0
    %602 = vmatpush1.bf16.msra.mxu0 0
    %603 = vmatprep.subr.bf16.mxu0 0
    %604 = vmatpush1.bf16.msra.mxu0 0
    %605 = vmatprep.subr.bf16.mxu0 0
    %606 = vmatpush1.bf16.msra.mxu0 %v589
    %607 = vmatprep.subr.bf16.mxu0 0
    %608 = vmatpush2.bf16.msra.mxu0 0
    %609 = vmatprep.subr.bf16.mxu0 0
    %610 = vmatpush2.bf16.msra.mxu0 0
    %611 = vmatprep.subr.bf16.mxu0 0
    %612 = vmatpush2.bf16.msra.mxu0 0
    %613 = vmatprep.subr.bf16.mxu0 0
    %614 = vmatpush2.bf16.msra.mxu0 0
    %615 = vmatprep.subr.bf16.mxu0 0
    %616 = vmatpush2.bf16.msra.mxu0 0
    %617 = vmatprep.subr.bf16.mxu0 0
    %618 = vmatpush2.bf16.msra.mxu0 0
    %619 = vmatprep.subr.bf16.mxu0 0
    %620 = vmatpush2.bf16.msra.mxu0 0
    %621 = vmatprep.subr.bf16.mxu0 0
    %622 = vmatpush2.bf16.msra.mxu0 0
    %623 = vmatprep.mubr.bf16.mxu0 0
    %624 = vmatmul.mubr.bf16.gmra.mxu0 %v586
    %v625 = vpop.f32.mrf.mxu0
    %v626 = vadd.f32 0.0, %v625
    %v627 = vpop.f32.mrf.mxu0
    %v628 = vpop.f32.mrf.mxu0
    %v629 = vpop.f32.mrf.mxu0
    %630 = vdwg.mxu0
    %v632 = vsel %vm308, %v307, 0
    %v635 = vsel %vm133, %v225, 0
    %637 = vmatprep.subr.bf16.mxu0 0
    %638 = vmatpush1.bf16.msra.mxu0 0
    %639 = vmatprep.subr.bf16.mxu0 0
    %640 = vmatpush1.bf16.msra.mxu0 0
    %641 = vmatprep.subr.bf16.mxu0 0
    %642 = vmatpush1.bf16.msra.mxu0 0
    %643 = vmatprep.subr.bf16.mxu0 0
    %644 = vmatpush1.bf16.msra.mxu0 0
    %645 = vmatprep.subr.bf16.mxu0 0
    %646 = vmatpush1.bf16.msra.mxu0 0
    %647 = vmatprep.subr.bf16.mxu0 0
    %648 = vmatpush1.bf16.msra.mxu0 0
    %649 = vmatprep.subr.bf16.mxu0 0
    %650 = vmatpush1.bf16.msra.mxu0 0
    %651 = vmatprep.subr.bf16.mxu0 0
    %652 = vmatpush1.bf16.msra.mxu0 %v635
    %653 = vmatprep.subr.bf16.mxu0 0
    %654 = vmatpush2.bf16.msra.mxu0 0
    %655 = vmatprep.subr.bf16.mxu0 0
    %656 = vmatpush2.bf16.msra.mxu0 0
    %657 = vmatprep.subr.bf16.mxu0 0
    %658 = vmatpush2.bf16.msra.mxu0 0
    %659 = vmatprep.subr.bf16.mxu0 0
    %660 = vmatpush2.bf16.msra.mxu0 0
    %661 = vmatprep.subr.bf16.mxu0 0
    %662 = vmatpush2.bf16.msra.mxu0 0
    %663 = vmatprep.subr.bf16.mxu0 0
    %664 = vmatpush2.bf16.msra.mxu0 0
    %665 = vmatprep.subr.bf16.mxu0 0
    %666 = vmatpush2.bf16.msra.mxu0 0
    %667 = vmatprep.subr.bf16.mxu0 0
    %668 = vmatpush2.bf16.msra.mxu0 0
    %669 = vmatprep.mubr.bf16.mxu0 0
    %670 = vmatmul.mubr.bf16.gmra.mxu0 %v632
    %v671 = vpop.f32.mrf.mxu0
    %v672 = vadd.f32 0.0, %v671
    %v673 = vpop.f32.mrf.mxu0
    %v674 = vpop.f32.mrf.mxu0
    %v675 = vpop.f32.mrf.mxu0
    %676 = vdwg.mxu0
    %v677 = vadd.f32 %v350, 1e-08
    %v678 = vadd.f32 %v396, 1e-08
    %v679 = vadd.f32 %v442, 1e-08
    %v680 = vadd.f32 %v488, 1e-08
    %v681 = vadd.f32 %v534, 1e-08
    %v682 = vadd.f32 %v580, 1e-08
    %v683 = vadd.f32 %v626, 1e-08
    %v684 = vadd.f32 %v672, 1e-08
    %686 = vset.pattern.permute.xlu0 32
    %687 = vperm.xlu0 %686, %v677
    %v688 = vpop.permute.xlu0 %687
    %691 = vset.pattern.permute.xlu0 32
    %692 = vperm.xlu0 %691, %v678
    %v693 = vpop.permute.xlu0 %692
    %696 = vset.pattern.permute.xlu0 32
    %697 = vperm.xlu0 %696, %v679
    %v698 = vpop.permute.xlu0 %697
    %701 = vset.pattern.permute.xlu0 32
    %702 = vperm.xlu0 %701, %v680
    %v703 = vpop.permute.xlu0 %702
    %706 = vset.pattern.permute.xlu0 32
    %707 = vperm.xlu0 %706, %v681
    %v708 = vpop.permute.xlu0 %707
    %711 = vset.pattern.permute.xlu0 32
    %712 = vperm.xlu0 %711, %v682
    %v713 = vpop.permute.xlu0 %712
    %716 = vset.pattern.permute.xlu0 32
    %717 = vperm.xlu0 %716, %v683
    %v718 = vpop.permute.xlu0 %717
    %721 = vset.pattern.permute.xlu0 32
    %722 = vperm.xlu0 %721, %v684
    %v723 = vpop.permute.xlu0 %722
    %v725 = vrcp.pop %v688
    %v726 = vmul.f32 %v350, %v725
    %v727 = vrcp.pop %v693
    %v728 = vmul.f32 %v396, %v727
    %v729 = vrcp.pop %v698
    %v730 = vmul.f32 %v442, %v729
    %v731 = vrcp.pop %v703
    %v732 = vmul.f32 %v488, %v731
    %v733 = vrcp.pop %v708
    %v734 = vmul.f32 %v534, %v733
    %v735 = vrcp.pop %v713
    %v736 = vmul.f32 %v580, %v735
    %v737 = vrcp.pop %v718
    %v738 = vmul.f32 %v626, %v737
    %v739 = vrcp.pop %v723
    %v740 = vmul.f32 %v672, %v739
    %v741 = vmul.f32 %v726, %v726
    %v742 = vmul.f32 %v728, %v728
    %v743 = vmul.f32 %v730, %v730
    %v744 = vmul.f32 %v732, %v732
    %v745 = vmul.f32 %v734, %v734
    %v746 = vmul.f32 %v736, %v736
    %v747 = vmul.f32 %v738, %v738
    %v748 = vmul.f32 %v740, %v740
    %vm749 = vcmask 253952
    %v750 = vsel %vm749, %v741, 0.0
    %751 = vadd.xlane.f32.xlu0 %v750
    %v752 = vpop.xlane.xlu0 %751
    %v753 = vsel %vm749, %v742, 0.0
    %754 = vadd.xlane.f32.xlu0 %v753
    %v755 = vpop.xlane.xlu0 %754
    %v756 = vsel %vm749, %v743, 0.0
    %757 = vadd.xlane.f32.xlu0 %v756
    %v758 = vpop.xlane.xlu0 %757
    %v759 = vsel %vm749, %v744, 0.0
    %760 = vadd.xlane.f32.xlu0 %v759
    %v761 = vpop.xlane.xlu0 %760
    %v762 = vsel %vm749, %v745, 0.0
    %763 = vadd.xlane.f32.xlu0 %v762
    %v764 = vpop.xlane.xlu0 %763
    %v765 = vsel %vm749, %v746, 0.0
    %766 = vadd.xlane.f32.xlu0 %v765
    %v767 = vpop.xlane.xlu0 %766
    %v768 = vsel %vm749, %v747, 0.0
    %769 = vadd.xlane.f32.xlu0 %v768
    %v770 = vpop.xlane.xlu0 %769
    %v771 = vsel %vm749, %v748, 0.0
    %772 = vadd.xlane.f32.xlu0 %v771
    %v773 = vpop.xlane.xlu0 %772
    %v774 = vrsqrt.pop %v752
    %v775 = vmul.f32 %v752, %v774
    %vm776 = vcmp.eq.f32.partialorder %v752, inf
    %v777 = vsel %vm776, %v752, %v775
    %vm778 = vcmp.eq.f32.partialorder %v752, 0.0
    %v779 = vand.u32 %v752, 2147483648
    %v780 = vsel %vm778, %v779, %v777
    %v781 = vrsqrt.pop %v755
    %v782 = vmul.f32 %v755, %v781
    %vm783 = vcmp.eq.f32.partialorder %v755, inf
    %v784 = vsel %vm783, %v755, %v782
    %vm785 = vcmp.eq.f32.partialorder %v755, 0.0
    %v786 = vand.u32 %v755, 2147483648
    %v787 = vsel %vm785, %v786, %v784
    %v788 = vrsqrt.pop %v758
    %v789 = vmul.f32 %v758, %v788
    %vm790 = vcmp.eq.f32.partialorder %v758, inf
    %v791 = vsel %vm790, %v758, %v789
    %vm792 = vcmp.eq.f32.partialorder %v758, 0.0
    %v793 = vand.u32 %v758, 2147483648
    %v794 = vsel %vm792, %v793, %v791
    %v795 = vrsqrt.pop %v761
    %v796 = vmul.f32 %v761, %v795
    %vm797 = vcmp.eq.f32.partialorder %v761, inf
    %v798 = vsel %vm797, %v761, %v796
    %vm799 = vcmp.eq.f32.partialorder %v761, 0.0
    %v800 = vand.u32 %v761, 2147483648
    %v801 = vsel %vm799, %v800, %v798
    %v802 = vrsqrt.pop %v764
    %v803 = vmul.f32 %v764, %v802
    %vm804 = vcmp.eq.f32.partialorder %v764, inf
    %v805 = vsel %vm804, %v764, %v803
    %vm806 = vcmp.eq.f32.partialorder %v764, 0.0
    %v807 = vand.u32 %v764, 2147483648
    %v808 = vsel %vm806, %v807, %v805
    %v809 = vrsqrt.pop %v767
    %v810 = vmul.f32 %v767, %v809
    %vm811 = vcmp.eq.f32.partialorder %v767, inf
    %v812 = vsel %vm811, %v767, %v810
    %vm813 = vcmp.eq.f32.partialorder %v767, 0.0
    %v814 = vand.u32 %v767, 2147483648
    %v815 = vsel %vm813, %v814, %v812
    %v816 = vrsqrt.pop %v770
    %v817 = vmul.f32 %v770, %v816
    %vm818 = vcmp.eq.f32.partialorder %v770, inf
    %v819 = vsel %vm818, %v770, %v817
    %vm820 = vcmp.eq.f32.partialorder %v770, 0.0
    %v821 = vand.u32 %v770, 2147483648
    %v822 = vsel %vm820, %v821, %v819
    %v823 = vrsqrt.pop %v773
    %v824 = vmul.f32 %v773, %v823
    %vm825 = vcmp.eq.f32.partialorder %v773, inf
    %v826 = vsel %vm825, %v773, %v824
    %vm827 = vcmp.eq.f32.partialorder %v773, 0.0
    %v828 = vand.u32 %v773, 2147483648
    %v829 = vsel %vm827, %v828, %v826
    %v830 = vadd.f32 %v780, 1e-08
    %v831 = vadd.f32 %v787, 1e-08
    %v832 = vadd.f32 %v794, 1e-08
    %v833 = vadd.f32 %v801, 1e-08
    %v834 = vadd.f32 %v808, 1e-08
    %v835 = vadd.f32 %v815, 1e-08
    %v836 = vadd.f32 %v822, 1e-08
    %v837 = vadd.f32 %v829, 1e-08
    %v838 = vrcp.pop %v830
    %v839 = vmul.f32 %v726, %v838
    %v840 = vrcp.pop %v831
    %v841 = vmul.f32 %v728, %v840
    %v842 = vrcp.pop %v832
    %v843 = vmul.f32 %v730, %v842
    %v844 = vrcp.pop %v833
    %v845 = vmul.f32 %v732, %v844
    %v846 = vrcp.pop %v834
    %v847 = vmul.f32 %v734, %v846
    %v848 = vrcp.pop %v835
    %v849 = vmul.f32 %v736, %v848
    %v850 = vrcp.pop %v836
    %v851 = vmul.f32 %v738, %v850
    %v852 = vrcp.pop %v837
    %v853 = vmul.f32 %v740, %v852
    %854 = vst.msk [vmem:[#allocation2] sm:$0x1] %vm749, %v839
    %855 = vst.msk [vmem:[#allocation2 + $0x1] sm:$0x1] %vm749, %v841
    %856 = vst.msk [vmem:[#allocation2 + $0x2] sm:$0x1] %vm749, %v843
    %857 = vst.msk [vmem:[#allocation2 + $0x3] sm:$0x1] %vm749, %v845
    %858 = vst.msk [vmem:[#allocation2 + $0x4] sm:$0x1] %vm749, %v847
    %859 = vst.msk [vmem:[#allocation2 + $0x5] sm:$0x1] %vm749, %v849
    %860 = vst.msk [vmem:[#allocation2 + $0x6] sm:$0x1] %vm749, %v851
    %861 = vst.msk [vmem:[#allocation2 + $0x7] sm:$0x1] %vm749, %v853
    // Predicated region
    $region22: #{tpu_custom_call.1} parent=1 // pred_check
      _
    $region23: #{tpu_custom_call.1} parent=1 // pred_check_branch
      %863 = sbr.rel (0) target = $region25
    $region24: #{tpu_custom_call.1} parent=1 // pred_region
      %s865 = ssub.s32 128, 128
      %866 = vsyncadd [#allocation3], %s865
      %s867 = sshll.u32 [#allocation2], 4
      %s868 = int_to_ptr.vmem [resolvable:$true] %s867
      %873 = dma.vmem_to_hbm [thread:$0]  %s868, 128, %s5, [#allocation3], 16, 16, 1
    $region25: #{tpu_custom_call.1} parent=1 // pred_fallthru
      _
    // Predicated region
    $region26: #{tpu_custom_call.1} parent=1 // pred_check
      _
    $region27: #{tpu_custom_call.1} parent=1 // pred_check_branch
      %875 = sbr.rel (0) target = $region29
    $region28: #{tpu_custom_call.1} parent=1 // pred_region
      %876 = dma.done [#allocation3], 128
    $region29: #{tpu_custom_call.1} parent=1 // pred_fallthru
      _
    %877 = vsyncpa [#allocation3], 1

</llo_original>
